<compile_context>
chip_gen: v5e
topology: v5e:2x2
jax: 0.10.0
libtpu: 0.0.40
codegen_flags: <defaults>
</compile_context>

<pallas_src>
import jax
import jax.numpy as jnp
from jax.experimental import pallas as pl
from jax.experimental.pallas import tpu as pltpu


def _round_up(x, m):
    return (x + m - 1) // m * m


# ----------------------- pass 1: serial recurrence kernel --------------------
def _make_recurrence_kernel(tt):
    """h_t = xproj_t + h_{t-1} @ Wh^T for a (tt, BB, Hp) time/batch block."""

    def kernel(xproj_ref, h0_ref, wh_ref, hseq_ref, h_carry):
        tb = pl.program_id(1)

        # (Re)initialise the carried hidden state at the start of each batch
        # block's time sweep (each core has its own scratch -> safe).
        @pl.when(tb == 0)
        def _():
            h_carry[...] = h0_ref[...]

        wh = wh_ref[...]  # loop-invariant RHS; VMEM-resident across the whole call.
        # TODO(synk): pltpu.matmul_push_rhs/matmul_acc_lhs would make Wh truly
        # weight-stationary on the MXU across the unrolled time block; keeping it
        # as the loop-invariant RHS of jnp.dot is the portable form.

        def step(t, h):
            h_new = xproj_ref[t] + jnp.dot(
                h.astype(wh.dtype), wh, preferred_element_type=jnp.float32)
            hseq_ref[t] = h_new.astype(hseq_ref.dtype)
            return h_new

        # Short fixed trip count -> fully unrolled for LLO scheduler visibility.
        h_carry[...] = jax.lax.fori_loop(0, tt, step, h_carry[...], unroll=True)

    return kernel


# --------------- pass 2: output projection + log-softmax (parallel) ----------
def _make_h2o_kernel(n_out):
    def kernel(h_ref, wo_ref, bo_ref, out_ref):
        # Padded output lanes carry a -1e30 bias -> exp(...) == 0 there, so the
        # reduction over the full 128-wide lane block is exact.
        logits = jnp.dot(h_ref[...].astype(wo_ref.dtype), wo_ref[...],
                         preferred_element_type=jnp.float32) + bo_ref[...]
        m = jnp.max(logits, axis=-1, keepdims=True)
        shifted = logits - m
        lse = jnp.log(jnp.sum(jnp.exp(shifted), axis=-1, keepdims=True))
        # Store only the real O lanes (cuts writeback 16x vs padded-lane output).
        out_ref[...] = (shifted - lse)[:, :n_out].astype(out_ref.dtype)

    return kernel


# ------------------------------ parameter prep -------------------------------
def prepare_params(w_i2h, b_i2h, w_h2o, b_h2o, input_size,
                   compute_dtype=jnp.float32):
    """One-time parameter prep (hoisted out of the per-call / per-step path).

    Splits W_i2h into input / hidden halves, transposes for y = x @ W^T,
    zero-pads lane dims to multiples of 128 (so no padded activation copies are
    ever materialized), and optionally casts matmul operands to bf16 for the
    v6e/v7x MXU.  Biases / accumulation stay f32.
    """
    H, IH = w_i2h.shape
    I = input_size
    assert IH == I + H
    O = w_h2o.shape[0]
    Hp = _round_up(H, 128)
    Op = _round_up(O, 128)

    # concat([x, h]) @ W^T == x @ W[:, :I]^T + h @ W[:, I:]^T
    wx_t = jnp.transpose(w_i2h[:, :I]).astype(compute_dtype)   # (I, H)
    wh_t = jnp.transpose(w_i2h[:, I:]).astype(compute_dtype)   # (H, H)
    wo_t = jnp.transpose(w_h2o).astype(compute_dtype)          # (H, O)

    wx_p = jnp.zeros((I, Hp), compute_dtype).at[:, :H].set(wx_t)
    wh_p = jnp.zeros((Hp, Hp), compute_dtype).at[:H, :H].set(wh_t)
    wo_p = jnp.zeros((Hp, Op), compute_dtype).at[:H, :O].set(wo_t)
    bi_p = jnp.zeros((Hp,), jnp.float32).at[:H].set(b_i2h.astype(jnp.float32))
    # -1e30 on padded lanes -> exp() underflows to 0 inside the log-softmax.
    bo_p = jnp.full((1, Op), -1e30, jnp.float32).at[0, :O].set(
        b_h2o.astype(jnp.float32))

    return dict(wx_p=wx_p, bi_p=bi_p, wh_p=wh_p, wo_p=wo_p, bo_p=bo_p,
                I=I, H=H, O=O, Hp=Hp, Op=Op)


# --------------------------------- forward -----------------------------------
def rnn_forward(xs, h0, params):
    """Run the RNN cell over a full sequence.

    xs: (T, B, I) inputs, h0: (B, H) initial hidden (module's initHidden()).
    Returns (log_probs (T, B, O), hiddens (T, B, H)) -- exactly the per-step
    (output, hidden) pairs T successive calls of the PyTorch forward produce.
    """
    T, B, I = xs.shape
    H, O, Hp, Op = params["H"], params["O"], params["Hp"], params["Op"]
    assert I == params["I"] and h0.shape == (B, H)
    cdt = params["wh_p"].dtype

    # ---- batch blocking: multiple of 8 sublanes; split in two when B >= 16 so
    # ---- v7x's two TensorCores both get work on the parallel grid axis.
    Bp = _round_up(B, 8) if B <= 128 else _round_up(B, 128)
    if Bp > 128:
        BB = 128
    elif Bp >= 16 and Bp % 16 == 0:
        BB = Bp // 2
    else:
        BB = Bp
    nb = Bp // BB

    # ---- time blocking: Tt timesteps per grid step (amortizes per-step
    # ---- overhead, keeps double-buffered blocks small enough for v7x VMEM).
    Tt = min(T, 32)
    Tp = _round_up(T, Tt)
    n_tb = Tp // Tt

    # ---- pad inputs on batch/time only (lane padding comes from padded weights)
    if (Tp, Bp) != (T, B):
        xs_p = jnp.zeros((Tp, Bp, I), xs.dtype).at[:T, :B].set(xs)
    else:
        xs_p = xs
    h0_p = jnp.zeros((Bp, Hp), jnp.float32).at[:B, :H].set(h0.astype(jnp.float32))

    # ---- pass 0: input projection for ALL timesteps as one large matmul;
    # ---- emitted directly at padded lane width (no extra padded copy).
    xproj = jnp.einsum("tbi,ih->tbh", xs_p.astype(cdt), params["wx_p"],
                       preferred_element_type=jnp.float32) + params["bi_p"]

    # ---- pass 1: serial recurrence (only xproj_t + h @ Wh^T per timestep) ----
    hseq = pl.pallas_call(
        _make_recurrence_kernel(Tt),
        out_shape=jax.ShapeDtypeStruct((Tp, Bp, Hp), jnp.float32),
        grid_spec=pltpu.PrefetchScalarGridSpec(
            num_scalar_prefetch=0,
            grid=(nb, n_tb),
            in_specs=[
                pl.BlockSpec((Tt, BB, Hp), lambda b, t: (t, b, 0)),  # xproj block
                pl.BlockSpec((BB, Hp), lambda b, t: (b, 0)),         # h0
                pl.BlockSpec((Hp, Hp), lambda b, t: (0, 0)),         # Wh^T (resident)
            ],
            out_specs=pl.BlockSpec((Tt, BB, Hp), lambda b, t: (t, b, 0)),
            scratch_shapes=[pltpu.VMEM((BB, Hp), jnp.float32)],      # hidden carry
        ),
        compiler_params=pltpu.CompilerParams(
            dimension_semantics=("parallel", "arbitrary"),
            vmem_limit_bytes=32 * 1024 * 1024,
        ),
    )(xproj, h0_p, params["wh_p"])

    # ---- pass 2: h2o + log-softmax over all rows, fully parallel -------------
    Rp = Tp * Bp
    RB = min(Rp, 512)
    while Rp % RB != 0:
        RB -= 8
    hseq_2d = hseq.reshape(Rp, Hp)  # contiguous -> free reshape

    log_p = pl.pallas_call(
        _make_h2o_kernel(O),
        out_shape=jax.ShapeDtypeStruct((Rp, O), jnp.float32),
        grid_spec=pltpu.PrefetchScalarGridSpec(
            num_scalar_prefetch=0,
            grid=(Rp // RB,),
            in_specs=[
                pl.BlockSpec((RB, Hp), lambda r: (r, 0)),            # hidden rows
                pl.BlockSpec((Hp, Op), lambda r: (0, 0)),            # Wo^T (resident)
                pl.BlockSpec((1, Op), lambda r: (0, 0)),             # b_h2o (padded)
            ],
            out_specs=pl.BlockSpec((RB, O), lambda r: (r, 0)),
        ),
        compiler_params=pltpu.CompilerParams(
            dimension_semantics=("parallel",),
            vmem_limit_bytes=32 * 1024 * 1024,
        ),
    )(hseq_2d, params["wo_p"], params["bo_p"])

    log_probs = log_p.reshape(Tp, Bp, O)[:T, :B, :]
    hiddens = hseq[:T, :B, :H]
    return log_probs, hiddens


def rnn_cell(x, hidden, params):
    """Single-step forward matching the PyTorch module's forward() signature."""
    log_p, hid = rnn_forward(x[None], hidden, params)
    return log_p[0], hid[0]


# ------------------------------ reference ------------------------------------
def _ref_forward_seq(xs, h0, w_i2h, b_i2h, w_h2o, b_h2o):
    def step(h, x):
        combined = jnp.concatenate([x, h], axis=1)
        h_new = combined @ w_i2h.T + b_i2h
        logits = h_new @ w_h2o.T + b_h2o
        return h_new, (jax.nn.log_softmax(logits, axis=1), h_new)

    _, (outs, hs) = jax.lax.scan(step, h0, xs)
    return outs, hs


if __name__ == "__main__":
    # Small shapes consistent with the module's forward.
    seq_len, batch = 8, 2
    input_size, hidden_size, output_size = 16, 32, 8

    key = jax.random.PRNGKey(0)
    k1, k2, k3, k4, k5 = jax.random.split(key, 5)

    xs = jax.random.normal(k1, (seq_len, batch, input_size), dtype=jnp.float32)
    h0 = jnp.zeros((batch, hidden_size), dtype=jnp.float32)   # initHidden()

    w_i2h = jax.random.normal(
        k2, (hidden_size, input_size + hidden_size), dtype=jnp.float32) * 0.1
    b_i2h = jax.random.normal(k3, (hidden_size,), dtype=jnp.float32) * 0.1
    w_h2o = jax.random.normal(
        k4, (output_size, hidden_size), dtype=jnp.float32) * 0.1
    b_h2o = jax.random.normal(k5, (output_size,), dtype=jnp.float32) * 0.1

    ref_lp, ref_h = _ref_forward_seq(xs, h0, w_i2h, b_i2h, w_h2o, b_h2o)

    # --- f32 weights (tight check) -------------------------------------------
    params_f32 = prepare_params(w_i2h, b_i2h, w_h2o, b_h2o, input_size,
                                compute_dtype=jnp.float32)
    log_probs, hiddens = rnn_forward(xs, h0, params_f32)
    jax.block_until_ready((log_probs, hiddens))
    assert jnp.allclose(log_probs, ref_lp, atol=1e-4, rtol=1e-4)
    assert jnp.allclose(hiddens, ref_h, atol=1e-4, rtol=1e-4)

    # Single-step API (module forward parity).
    lp1, h1 = rnn_cell(xs[0], h0, params_f32)
    jax.block_until_ready((lp1, h1))
    assert jnp.allclose(lp1, ref_lp[0], atol=1e-4, rtol=1e-4)
    assert jnp.allclose(h1, ref_h[0], atol=1e-4, rtol=1e-4)

    # --- bf16 weights (v6e / v7x MXU path), f32 accumulate + epilogue ---------
    params_bf16 = prepare_params(w_i2h, b_i2h, w_h2o, b_h2o, input_size,
                                 compute_dtype=jnp.bfloat16)
    log_probs_bf, hiddens_bf = rnn_forward(xs, h0, params_bf16)
    jax.block_until_ready((log_probs_bf, hiddens_bf))
    assert jnp.max(jnp.abs(log_probs_bf - ref_lp)) < 0.1
    assert jnp.max(jnp.abs(hiddens_bf - ref_h)) < 0.1

    print("KERNEL_OK")
</pallas_src>

<mosaic_0001>
module attributes {stable_mosaic.version = 11 : i64} {
  func.func @kernel(%arg0: i32, %arg1: i32, %arg2: memref<8x8x128xf32, #tpu.memory_space<vmem>>, %arg3: memref<8x128xf32, #tpu.memory_space<vmem>>, %arg4: memref<128x128xf32, #tpu.memory_space<vmem>>, %arg5: memref<8x8x128xf32, #tpu.memory_space<vmem>>, %arg6: memref<8x128xf32, #tpu.memory_space<vmem>>) attributes {dimension_semantics = [#tpu.dimension_semantics<parallel>, #tpu.dimension_semantics<arbitrary>], iteration_bounds = array<i64: 1, 1>, scalar_prefetch = 0 : i64, scratch_operands = 1 : i64, tpu.core_type = #tpu.core_type<tc>, window_params = [{transform_indices = @transform_0, window_bounds = array<i64: 8, 8, 128>}, {transform_indices = @transform_1, window_bounds = array<i64: 8, 128>}, {pipeline_mode = #tpu.pipeline_mode<synchronous>, transform_indices = @transform_2, window_bounds = array<i64: 128, 128>}, {transform_indices = @transform_3, window_bounds = array<i64: 8, 8, 128>}]} {
    %c0_i32 = arith.constant 0 : i32
    %0 = arith.cmpi eq, %arg1, %c0_i32 : i32
    %1 = arith.extui %0 : i1 to i32
    %c0_i32_0 = arith.constant 0 : i32
    %2 = arith.cmpi ne, %1, %c0_i32_0 : i32
    scf.if %2 {
      %c0_46 = arith.constant 0 : index
      %c0_47 = arith.constant 0 : index
      %78 = vector.load %arg3[%c0_46, %c0_47] : memref<8x128xf32, #tpu.memory_space<vmem>>, vector<8x128xf32>
      %c0_48 = arith.constant 0 : index
      %c0_49 = arith.constant 0 : index
      %79 = vector.load %arg6[%c0_48, %c0_49] : memref<8x128xf32, #tpu.memory_space<vmem>>, vector<8x128xf32>
      tpu.vector_store %arg6[%c0_48, %c0_49], %78 {strides = array<i32>} : memref<8x128xf32, #tpu.memory_space<vmem>>, vector<8x128xf32>,
    } else {
    }
    %c0 = arith.constant 0 : index
    %c0_1 = arith.constant 0 : index
    %3 = vector.load %arg4[%c0, %c0_1] : memref<128x128xf32, #tpu.memory_space<vmem>>, vector<128x128xf32>
    %c0_2 = arith.constant 0 : index
    %c0_3 = arith.constant 0 : index
    %4 = vector.load %arg6[%c0_2, %c0_3] : memref<8x128xf32, #tpu.memory_space<vmem>>, vector<8x128xf32>
    %c0_i32_4 = arith.constant 0 : i32
    %5 = arith.index_cast %c0_i32_4 : i32 to index
    %c0_5 = arith.constant 0 : index
    %c0_6 = arith.constant 0 : index
    %6 = vector.load %arg2[%5, %c0_5, %c0_6] : memref<8x8x128xf32, #tpu.memory_space<vmem>>, vector<1x8x128xf32>
    %7 = vector.shape_cast %6 : vector<1x8x128xf32> to vector<8x128xf32>
    %cst = arith.constant dense<0.000000e+00> : vector<8x128xf32>
    %8 = tpu.matmul %4, %3, %cst {dimension_numbers = #tpu.dot_dimension_numbers<[1], [0], [0], [1], [0, 0, 1, 1], [], []>} : vector<8x128xf32>, vector<128x128xf32>, vector<8x128xf32> -> vector<8x128xf32>
    %9 = arith.addf %7, %8 : vector<8x128xf32>
    %10 = arith.index_cast %c0_i32_4 : i32 to index
    %c0_7 = arith.constant 0 : index
    %c0_8 = arith.constant 0 : index
    %11 = vector.load %arg5[%10, %c0_7, %c0_8] : memref<8x8x128xf32, #tpu.memory_space<vmem>>, vector<1x8x128xf32>
    %12 = vector.shape_cast %11 : vector<1x8x128xf32> to vector<8x128xf32>
    %13 = vector.shape_cast %9 : vector<8x128xf32> to vector<1x8x128xf32>
    tpu.vector_store %arg5[%10, %c0_7, %c0_8], %13 {strides = array<i32>} : memref<8x8x128xf32, #tpu.memory_space<vmem>>, vector<1x8x128xf32>,
    %c1_i32 = arith.constant 1 : i32
    %14 = arith.index_cast %c1_i32 : i32 to index
    %c0_9 = arith.constant 0 : index
    %c0_10 = arith.constant 0 : index
    %15 = vector.load %arg2[%14, %c0_9, %c0_10] : memref<8x8x128xf32, #tpu.memory_space<vmem>>, vector<1x8x128xf32>
    %16 = vector.shape_cast %15 : vector<1x8x128xf32> to vector<8x128xf32>
    %cst_11 = arith.constant dense<0.000000e+00> : vector<8x128xf32>
    %17 = tpu.matmul %9, %3, %cst_11 {dimension_numbers = #tpu.dot_dimension_numbers<[1], [0], [0], [1], [0, 0, 1, 1], [], []>} : vector<8x128xf32>, vector<128x128xf32>, vector<8x128xf32> -> vector<8x128xf32>
    %18 = arith.addf %16, %17 : vector<8x128xf32>
    %19 = arith.index_cast %c1_i32 : i32 to index
    %c0_12 = arith.constant 0 : index
    %c0_13 = arith.constant 0 : index
    %20 = vector.load %arg5[%19, %c0_12, %c0_13] : memref<8x8x128xf32, #tpu.memory_space<vmem>>, vector<1x8x128xf32>
    %21 = vector.shape_cast %20 : vector<1x8x128xf32> to vector<8x128xf32>
    %22 = vector.shape_cast %18 : vector<8x128xf32> to vector<1x8x128xf32>
    tpu.vector_store %arg5[%19, %c0_12, %c0_13], %22 {strides = array<i32>} : memref<8x8x128xf32, #tpu.memory_space<vmem>>, vector<1x8x128xf32>,
    %c2_i32 = arith.constant 2 : i32
    %23 = arith.index_cast %c2_i32 : i32 to index
    %c0_14 = arith.constant 0 : index
    %c0_15 = arith.constant 0 : index
    %24 = vector.load %arg2[%23, %c0_14, %c0_15] : memref<8x8x128xf32, #tpu.memory_space<vmem>>, vector<1x8x128xf32>
    %25 = vector.shape_cast %24 : vector<1x8x128xf32> to vector<8x128xf32>
    %cst_16 = arith.constant dense<0.000000e+00> : vector<8x128xf32>
    %26 = tpu.matmul %18, %3, %cst_16 {dimension_numbers = #tpu.dot_dimension_numbers<[1], [0], [0], [1], [0, 0, 1, 1], [], []>} : vector<8x128xf32>, vector<128x128xf32>, vector<8x128xf32> -> vector<8x128xf32>
    %27 = arith.addf %25, %26 : vector<8x128xf32>
    %28 = arith.index_cast %c2_i32 : i32 to index
    %c0_17 = arith.constant 0 : index
    %c0_18 = arith.constant 0 : index
    %29 = vector.load %arg5[%28, %c0_17, %c0_18] : memref<8x8x128xf32, #tpu.memory_space<vmem>>, vector<1x8x128xf32>
    %30 = vector.shape_cast %29 : vector<1x8x128xf32> to vector<8x128xf32>
    %31 = vector.shape_cast %27 : vector<8x128xf32> to vector<1x8x128xf32>
    tpu.vector_store %arg5[%28, %c0_17, %c0_18], %31 {strides = array<i32>} : memref<8x8x128xf32, #tpu.memory_space<vmem>>, vector<1x8x128xf32>,
    %c3_i32 = arith.constant 3 : i32
    %32 = arith.index_cast %c3_i32 : i32 to index
    %c0_19 = arith.constant 0 : index
    %c0_20 = arith.constant 0 : index
    %33 = vector.load %arg2[%32, %c0_19, %c0_20] : memref<8x8x128xf32, #tpu.memory_space<vmem>>, vector<1x8x128xf32>
    %34 = vector.shape_cast %33 : vector<1x8x128xf32> to vector<8x128xf32>
    %cst_21 = arith.constant dense<0.000000e+00> : vector<8x128xf32>
    %35 = tpu.matmul %27, %3, %cst_21 {dimension_numbers = #tpu.dot_dimension_numbers<[1], [0], [0], [1], [0, 0, 1, 1], [], []>} : vector<8x128xf32>, vector<128x128xf32>, vector<8x128xf32> -> vector<8x128xf32>
    %36 = arith.addf %34, %35 : vector<8x128xf32>
    %37 = arith.index_cast %c3_i32 : i32 to index
    %c0_22 = arith.constant 0 : index
    %c0_23 = arith.constant 0 : index
    %38 = vector.load %arg5[%37, %c0_22, %c0_23] : memref<8x8x128xf32, #tpu.memory_space<vmem>>, vector<1x8x128xf32>
    %39 = vector.shape_cast %38 : vector<1x8x128xf32> to vector<8x128xf32>
    %40 = vector.shape_cast %36 : vector<8x128xf32> to vector<1x8x128xf32>
    tpu.vector_store %arg5[%37, %c0_22, %c0_23], %40 {strides = array<i32>} : memref<8x8x128xf32, #tpu.memory_space<vmem>>, vector<1x8x128xf32>,
    %c4_i32 = arith.constant 4 : i32
    %41 = arith.index_cast %c4_i32 : i32 to index
    %c0_24 = arith.constant 0 : index
    %c0_25 = arith.constant 0 : index
    %42 = vector.load %arg2[%41, %c0_24, %c0_25] : memref<8x8x128xf32, #tpu.memory_space<vmem>>, vector<1x8x128xf32>
    %43 = vector.shape_cast %42 : vector<1x8x128xf32> to vector<8x128xf32>
    %cst_26 = arith.constant dense<0.000000e+00> : vector<8x128xf32>
    %44 = tpu.matmul %36, %3, %cst_26 {dimension_numbers = #tpu.dot_dimension_numbers<[1], [0], [0], [1], [0, 0, 1, 1], [], []>} : vector<8x128xf32>, vector<128x128xf32>, vector<8x128xf32> -> vector<8x128xf32>
    %45 = arith.addf %43, %44 : vector<8x128xf32>
    %46 = arith.index_cast %c4_i32 : i32 to index
    %c0_27 = arith.constant 0 : index
    %c0_28 = arith.constant 0 : index
    %47 = vector.load %arg5[%46, %c0_27, %c0_28] : memref<8x8x128xf32, #tpu.memory_space<vmem>>, vector<1x8x128xf32>
    %48 = vector.shape_cast %47 : vector<1x8x128xf32> to vector<8x128xf32>
    %49 = vector.shape_cast %45 : vector<8x128xf32> to vector<1x8x128xf32>
    tpu.vector_store %arg5[%46, %c0_27, %c0_28], %49 {strides = array<i32>} : memref<8x8x128xf32, #tpu.memory_space<vmem>>, vector<1x8x128xf32>,
    %c5_i32 = arith.constant 5 : i32
    %50 = arith.index_cast %c5_i32 : i32 to index
    %c0_29 = arith.constant 0 : index
    %c0_30 = arith.constant 0 : index
    %51 = vector.load %arg2[%50, %c0_29, %c0_30] : memref<8x8x128xf32, #tpu.memory_space<vmem>>, vector<1x8x128xf32>
    %52 = vector.shape_cast %51 : vector<1x8x128xf32> to vector<8x128xf32>
    %cst_31 = arith.constant dense<0.000000e+00> : vector<8x128xf32>
    %53 = tpu.matmul %45, %3, %cst_31 {dimension_numbers = #tpu.dot_dimension_numbers<[1], [0], [0], [1], [0, 0, 1, 1], [], []>} : vector<8x128xf32>, vector<128x128xf32>, vector<8x128xf32> -> vector<8x128xf32>
    %54 = arith.addf %52, %53 : vector<8x128xf32>
    %55 = arith.index_cast %c5_i32 : i32 to index
    %c0_32 = arith.constant 0 : index
    %c0_33 = arith.constant 0 : index
    %56 = vector.load %arg5[%55, %c0_32, %c0_33] : memref<8x8x128xf32, #tpu.memory_space<vmem>>, vector<1x8x128xf32>
    %57 = vector.shape_cast %56 : vector<1x8x128xf32> to vector<8x128xf32>
    %58 = vector.shape_cast %54 : vector<8x128xf32> to vector<1x8x128xf32>
    tpu.vector_store %arg5[%55, %c0_32, %c0_33], %58 {strides = array<i32>} : memref<8x8x128xf32, #tpu.memory_space<vmem>>, vector<1x8x128xf32>,
    %c6_i32 = arith.constant 6 : i32
    %59 = arith.index_cast %c6_i32 : i32 to index
    %c0_34 = arith.constant 0 : index
    %c0_35 = arith.constant 0 : index
    %60 = vector.load %arg2[%59, %c0_34, %c0_35] : memref<8x8x128xf32, #tpu.memory_space<vmem>>, vector<1x8x128xf32>
    %61 = vector.shape_cast %60 : vector<1x8x128xf32> to vector<8x128xf32>
    %cst_36 = arith.constant dense<0.000000e+00> : vector<8x128xf32>
    %62 = tpu.matmul %54, %3, %cst_36 {dimension_numbers = #tpu.dot_dimension_numbers<[1], [0], [0], [1], [0, 0, 1, 1], [], []>} : vector<8x128xf32>, vector<128x128xf32>, vector<8x128xf32> -> vector<8x128xf32>
    %63 = arith.addf %61, %62 : vector<8x128xf32>
    %64 = arith.index_cast %c6_i32 : i32 to index
    %c0_37 = arith.constant 0 : index
    %c0_38 = arith.constant 0 : index
    %65 = vector.load %arg5[%64, %c0_37, %c0_38] : memref<8x8x128xf32, #tpu.memory_space<vmem>>, vector<1x8x128xf32>
    %66 = vector.shape_cast %65 : vector<1x8x128xf32> to vector<8x128xf32>
    %67 = vector.shape_cast %63 : vector<8x128xf32> to vector<1x8x128xf32>
    tpu.vector_store %arg5[%64, %c0_37, %c0_38], %67 {strides = array<i32>} : memref<8x8x128xf32, #tpu.memory_space<vmem>>, vector<1x8x128xf32>,
    %c7_i32 = arith.constant 7 : i32
    %68 = arith.index_cast %c7_i32 : i32 to index
    %c0_39 = arith.constant 0 : index
    %c0_40 = arith.constant 0 : index
    %69 = vector.load %arg2[%68, %c0_39, %c0_40] : memref<8x8x128xf32, #tpu.memory_space<vmem>>, vector<1x8x128xf32>
    %70 = vector.shape_cast %69 : vector<1x8x128xf32> to vector<8x128xf32>
    %cst_41 = arith.constant dense<0.000000e+00> : vector<8x128xf32>
    %71 = tpu.matmul %63, %3, %cst_41 {dimension_numbers = #tpu.dot_dimension_numbers<[1], [0], [0], [1], [0, 0, 1, 1], [], []>} : vector<8x128xf32>, vector<128x128xf32>, vector<8x128xf32> -> vector<8x128xf32>
    %72 = arith.addf %70, %71 : vector<8x128xf32>
    %73 = arith.index_cast %c7_i32 : i32 to index
    %c0_42 = arith.constant 0 : index
    %c0_43 = arith.constant 0 : index
    %74 = vector.load %arg5[%73, %c0_42, %c0_43] : memref<8x8x128xf32, #tpu.memory_space<vmem>>, vector<1x8x128xf32>
    %75 = vector.shape_cast %74 : vector<1x8x128xf32> to vector<8x128xf32>
    %76 = vector.shape_cast %72 : vector<8x128xf32> to vector<1x8x128xf32>
    tpu.vector_store %arg5[%73, %c0_42, %c0_43], %76 {strides = array<i32>} : memref<8x8x128xf32, #tpu.memory_space<vmem>>, vector<1x8x128xf32>,
    %c8_i32 = arith.constant 8 : i32
    %c0_44 = arith.constant 0 : index
    %c0_45 = arith.constant 0 : index
    %77 = vector.load %arg6[%c0_44, %c0_45] : memref<8x128xf32, #tpu.memory_space<vmem>>, vector<8x128xf32>
    tpu.vector_store %arg6[%c0_44, %c0_45], %72 {strides = array<i32>} : memref<8x128xf32, #tpu.memory_space<vmem>>, vector<8x128xf32>,
    return
  }
  func.func @transform_0(%arg0: i32, %arg1: i32) -> (i32, i32, i32) {
    %c0_i32 = arith.constant 0 : i32
    %c0_i32_0 = arith.constant 0 : i32
    return %arg1, %arg0, %c0_i32 : i32, i32, i32
  }
  func.func @transform_1(%arg0: i32, %arg1: i32) -> (i32, i32) {
    %c0_i32 = arith.constant 0 : i32
    %c0_i32_0 = arith.constant 0 : i32
    return %arg0, %c0_i32 : i32, i32
  }
  func.func @transform_2(%arg0: i32, %arg1: i32) -> (i32, i32) {
    %c0_i32 = arith.constant 0 : i32
    %c0_i32_0 = arith.constant 0 : i32
    %c0_i32_1 = arith.constant 0 : i32
    return %c0_i32, %c0_i32_0 : i32, i32
  }
  func.func @transform_3(%arg0: i32, %arg1: i32) -> (i32, i32, i32) {
    %c0_i32 = arith.constant 0 : i32
    %c0_i32_0 = arith.constant 0 : i32
    return %arg1, %arg0, %c0_i32 : i32, i32, i32
  }
}

</mosaic_0001>

<llo_original>
// kernel: tpu_custom_call.1
$region0: #{tpu_custom_call.1}
  #allocation0 [shape = 'u32[]', space=smem, size = 0x4, offset = 0x4, fixed_abs, tag = 'smem constant byte address 0x4 - core index']
  #allocation1 [shape = 'u32[72,128]{1,0:T(1,128)}', space=vmem, size = 0x9000, scoped, tag = 'internal scratch']
  #allocation2 [shape = 'f32[8,128]{1,0:T(8,128)}', space=vmem, size = 0x1000, scoped, tag = 'scratch operand']
  %s0 = inlined_call_operand.hbm [shape: f32[8,8,128], index: 0, kind: input, shape index: {}]
  %s1 = inlined_call_operand.hbm [shape: f32[8,128], index: 1, kind: input, shape index: {}]
  %s2 = inlined_call_operand.hbm [shape: f32[128,128], index: 2, kind: input, shape index: {}]
  %s3 = inlined_call_operand.hbm [shape: f32[8,8,128], index: 3, kind: output, shape index: {}]
  %s4 = sld [smem:[#allocation0]]
  $region38: #{tpu_custom_call.1} parent=0
    _
  %s6 = ssub.s32 1, %s4
  %s7 = scalar_select 0, %s6, %s4
  $region1: #{tpu_custom_call.1} parent=0
    #allocation3 [shape = 'u8[32768]{0}', space=vmem, size = 0x8000, scoped, tag = 'input window, operand 0, single buffered']
    #allocation4 [shape = 's32[1]{0}', space=sflag, size = 0x4, scoped, tag = 'scoped memory for tpu_custom_call.1']
    #allocation5 [shape = 's32[1]{0}', space=sflag, size = 0x4, scoped, tag = 'scoped memory for tpu_custom_call.1']
    #allocation6 [shape = 'u8[4096]{0}', space=vmem, size = 0x1000, scoped, tag = 'input window, operand 1, single buffered']
    #allocation7 [shape = 's32[1]{0}', space=sflag, size = 0x4, scoped, tag = 'scoped memory for tpu_custom_call.1']
    #allocation8 [shape = 'u8[65536]{0}', space=vmem, size = 0x10000, scoped, tag = 'input window, operand 2, single buffered']
    #allocation9 [shape = 'u8[32768]{0}', space=vmem, size = 0x8000, scoped, tag = 'output window, operand 0, single buffered']
    %8 = vsyncpa [#allocation4], 0
    %9 = vsyncpa [#allocation7], 0
    %10 = vsyncpa [#allocation5], 0
    // Predicated region
    $region2: #{tpu_custom_call.1} parent=1 // pred_check
      _
    $region3: #{tpu_custom_call.1} parent=1 // pred_check_branch
      %12 = sbr.rel (0) target = $region5
    $region4: #{tpu_custom_call.1} parent=1 // pred_region
      %14 = vsyncadd [#allocation4], 0
      %s15 = sshll.u32 %s0, 4
      %s16 = int_to_ptr.hbm [resolvable:$true] %s15
      %s17 = sshll.u32 [#allocation3], 4
      %s18 = int_to_ptr.vmem [resolvable:$true] %s17
      %23 = dma.hbm_to_vmem [thread:$0]  %s16, 1024, %s18, [#allocation4], 128, 128, 8
    $region5: #{tpu_custom_call.1} parent=1 // pred_fallthru
      _
    // Predicated region
    $region6: #{tpu_custom_call.1} parent=1 // pred_check
      _
    $region7: #{tpu_custom_call.1} parent=1 // pred_check_branch
      %25 = sbr.rel (0) target = $region9
    $region8: #{tpu_custom_call.1} parent=1 // pred_region
      %27 = vsyncadd [#allocation7], 0
      %s29 = sshll.u32 %s1, 4
      %s30 = int_to_ptr.hbm [resolvable:$true] %s29
      %s31 = sshll.u32 [#allocation6], 4
      %s32 = int_to_ptr.vmem [resolvable:$true] %s31
      %34 = dma.hbm_to_vmem [thread:$0]  %s30, 128, %s32, [#allocation7]
    $region9: #{tpu_custom_call.1} parent=1 // pred_fallthru
      _
    // Predicated region
    $region10: #{tpu_custom_call.1} parent=1 // pred_check
      _
    $region11: #{tpu_custom_call.1} parent=1 // pred_check_branch
      %36 = sbr.rel (0) target = $region13
    $region12: #{tpu_custom_call.1} parent=1 // pred_region
      %38 = vsyncadd [#allocation7], 0
      %s39 = sshll.u32 %s2, 4
      %s40 = int_to_ptr.hbm [resolvable:$true] %s39
      %s41 = sshll.u32 [#allocation8], 4
      %s42 = int_to_ptr.vmem [resolvable:$true] %s41
      %47 = dma.hbm_to_vmem [thread:$0]  %s40, 2048, %s42, [#allocation7], 128, 128, 8
    $region13: #{tpu_custom_call.1} parent=1 // pred_fallthru
      _
    // Predicated region
    $region14: #{tpu_custom_call.1} parent=1 // pred_check
      _
    $region15: #{tpu_custom_call.1} parent=1 // pred_check_branch
      %49 = sbr.rel (0) target = $region17
    $region16: #{tpu_custom_call.1} parent=1 // pred_region
      %51 = dma.done [#allocation4], 1024
    $region17: #{tpu_custom_call.1} parent=1 // pred_fallthru
      _
    // Predicated region
    $region18: #{tpu_custom_call.1} parent=1 // pred_check
      _
    $region19: #{tpu_custom_call.1} parent=1 // pred_check_branch
      %53 = sbr.rel (0) target = $region21
    $region20: #{tpu_custom_call.1} parent=1 // pred_region
      %55 = dma.done [#allocation7], 128
    $region21: #{tpu_custom_call.1} parent=1 // pred_fallthru
      _
    // Predicated region
    $region22: #{tpu_custom_call.1} parent=1 // pred_check
      _
    $region23: #{tpu_custom_call.1} parent=1 // pred_check_branch
      %57 = sbr.rel (0) target = $region25
    $region24: #{tpu_custom_call.1} parent=1 // pred_region
      %59 = dma.done [#allocation7], 2048
    $region25: #{tpu_custom_call.1} parent=1 // pred_fallthru
      _
    %p60 = scmp.eq.s32.totalorder 0, 0
    // Predicated region
    $region26: #{tpu_custom_call.1} parent=1 // pred_check
      %p61 = pneg %p60
    $region27: #{tpu_custom_call.1} parent=1 // pred_check_branch
      %63 = sbr.rel (%p61) target = $region29
    $region28: #{tpu_custom_call.1} parent=1 // pred_region
      %v64 = vld [vmem:[#allocation6] sm:$0xff]
      %65 = vst [vmem:[#allocation2] sm:$0xff] %v64
    $region29: #{tpu_custom_call.1} parent=1 // pred_fallthru
      _
    %v66 = vld [vmem:[#allocation8] sm:$0xff]
    %v67 = vld [vmem:[#allocation8 + $0x8] sm:$0xff]
    %v68 = vld [vmem:[#allocation8 + $0x10] sm:$0xff]
    %v69 = vld [vmem:[#allocation8 + $0x18] sm:$0xff]
    %v70 = vld [vmem:[#allocation8 + $0x20] sm:$0xff]
    %v71 = vld [vmem:[#allocation8 + $0x28] sm:$0xff]
    %v72 = vld [vmem:[#allocation8 + $0x30] sm:$0xff]
    %v73 = vld [vmem:[#allocation8 + $0x38] sm:$0xff]
    %v74 = vld [vmem:[#allocation8 + $0x40] sm:$0xff]
    %v75 = vld [vmem:[#allocation8 + $0x48] sm:$0xff]
    %v76 = vld [vmem:[#allocation8 + $0x50] sm:$0xff]
    %v77 = vld [vmem:[#allocation8 + $0x58] sm:$0xff]
    %v78 = vld [vmem:[#allocation8 + $0x60] sm:$0xff]
    %v79 = vld [vmem:[#allocation8 + $0x68] sm:$0xff]
    %v80 = vld [vmem:[#allocation8 + $0x70] sm:$0xff]
    %v81 = vld [vmem:[#allocation8 + $0x78] sm:$0xff]
    %v82 = vld [vmem:[#allocation2] sm:$0xff]
    %v83 = vld [vmem:[#allocation3] sm:$0xff]
    %84 = vmatpush.msra.mxu0 %v81
    %85 = vmatpush.msra.mxu0 %v80
    %86 = vmatpush.msra.mxu0 %v79
    %87 = vmatpush.msra.mxu0 %v78
    %88 = vmatpush.msra.mxu0 %v77
    %89 = vmatpush.msra.mxu0 %v76
    %90 = vmatpush.msra.mxu0 %v75
    %91 = vmatpush.msra.mxu0 %v74
    %92 = vmatpush.msra.mxu0 %v73
    %93 = vmatpush.msra.mxu0 %v72
    %94 = vmatpush.msra.mxu0 %v71
    %95 = vmatpush.msra.mxu0 %v70
    %96 = vmatpush.msra.mxu0 %v69
    %97 = vmatpush.msra.mxu0 %v68
    %98 = vmatpush.msra.mxu0 %v67
    %99 = vmatpush.msra.mxu0 %v66
    %100 = vmatmul.f32.gmra.mxu0 %v82
    %v101 = vpop.f32.mrf.mxu0
    %v102 = vadd.f32 0.0, %v101
    %103 = vdwg.mxu0
    %v104 = vadd.f32 %v83, %v102
    %105 = vst [vmem:[#allocation9] sm:$0xff] %v104
    %s106 = scalar_lea.vmem [#allocation3], 8
    %v107 = vld [vmem:[%s106] sm:$0xff]
    %108 = vmatpush.msra.mxu0 %v81
    %109 = vmatpush.msra.mxu0 %v80
    %110 = vmatpush.msra.mxu0 %v79
    %111 = vmatpush.msra.mxu0 %v78
    %112 = vmatpush.msra.mxu0 %v77
    %113 = vmatpush.msra.mxu0 %v76
    %114 = vmatpush.msra.mxu0 %v75
    %115 = vmatpush.msra.mxu0 %v74
    %116 = vmatpush.msra.mxu0 %v73
    %117 = vmatpush.msra.mxu0 %v72
    %118 = vmatpush.msra.mxu0 %v71
    %119 = vmatpush.msra.mxu0 %v70
    %120 = vmatpush.msra.mxu0 %v69
    %121 = vmatpush.msra.mxu0 %v68
    %122 = vmatpush.msra.mxu0 %v67
    %123 = vmatpush.msra.mxu0 %v66
    %124 = vmatmul.f32.gmra.mxu0 %v104
    %v125 = vpop.f32.mrf.mxu0
    %v126 = vadd.f32 0.0, %v125
    %127 = vdwg.mxu0
    %v128 = vadd.f32 %v107, %v126
    %s129 = scalar_lea.vmem [#allocation9], 8
    %130 = vst [vmem:[%s129] sm:$0xff] %v128
    %s131 = scalar_lea.vmem [#allocation3], 16
    %v132 = vld [vmem:[%s131] sm:$0xff]
    %133 = vmatpush.msra.mxu0 %v81
    %134 = vmatpush.msra.mxu0 %v80
    %135 = vmatpush.msra.mxu0 %v79
    %136 = vmatpush.msra.mxu0 %v78
    %137 = vmatpush.msra.mxu0 %v77
    %138 = vmatpush.msra.mxu0 %v76
    %139 = vmatpush.msra.mxu0 %v75
    %140 = vmatpush.msra.mxu0 %v74
    %141 = vmatpush.msra.mxu0 %v73
    %142 = vmatpush.msra.mxu0 %v72
    %143 = vmatpush.msra.mxu0 %v71
    %144 = vmatpush.msra.mxu0 %v70
    %145 = vmatpush.msra.mxu0 %v69
    %146 = vmatpush.msra.mxu0 %v68
    %147 = vmatpush.msra.mxu0 %v67
    %148 = vmatpush.msra.mxu0 %v66
    %149 = vmatmul.f32.gmra.mxu0 %v128
    %v150 = vpop.f32.mrf.mxu0
    %v151 = vadd.f32 0.0, %v150
    %152 = vdwg.mxu0
    %v153 = vadd.f32 %v132, %v151
    %s154 = scalar_lea.vmem [#allocation9], 16
    %155 = vst [vmem:[%s154] sm:$0xff] %v153
    %s156 = scalar_lea.vmem [#allocation3], 24
    %v157 = vld [vmem:[%s156] sm:$0xff]
    %158 = vmatpush.msra.mxu0 %v81
    %159 = vmatpush.msra.mxu0 %v80
    %160 = vmatpush.msra.mxu0 %v79
    %161 = vmatpush.msra.mxu0 %v78
    %162 = vmatpush.msra.mxu0 %v77
    %163 = vmatpush.msra.mxu0 %v76
    %164 = vmatpush.msra.mxu0 %v75
    %165 = vmatpush.msra.mxu0 %v74
    %166 = vmatpush.msra.mxu0 %v73
    %167 = vmatpush.msra.mxu0 %v72
    %168 = vmatpush.msra.mxu0 %v71
    %169 = vmatpush.msra.mxu0 %v70
    %170 = vmatpush.msra.mxu0 %v69
    %171 = vmatpush.msra.mxu0 %v68
    %172 = vmatpush.msra.mxu0 %v67
    %173 = vmatpush.msra.mxu0 %v66
    %174 = vmatmul.f32.gmra.mxu0 %v153
    %v175 = vpop.f32.mrf.mxu0
    %v176 = vadd.f32 0.0, %v175
    %177 = vdwg.mxu0
    %v178 = vadd.f32 %v157, %v176
    %s179 = scalar_lea.vmem [#allocation9], 24
    %180 = vst [vmem:[%s179] sm:$0xff] %v178
    %s181 = scalar_lea.vmem [#allocation3], 32
    %v182 = vld [vmem:[%s181] sm:$0xff]
    %183 = vmatpush.msra.mxu0 %v81
    %184 = vmatpush.msra.mxu0 %v80
    %185 = vmatpush.msra.mxu0 %v79
    %186 = vmatpush.msra.mxu0 %v78
    %187 = vmatpush.msra.mxu0 %v77
    %188 = vmatpush.msra.mxu0 %v76
    %189 = vmatpush.msra.mxu0 %v75
    %190 = vmatpush.msra.mxu0 %v74
    %191 = vmatpush.msra.mxu0 %v73
    %192 = vmatpush.msra.mxu0 %v72
    %193 = vmatpush.msra.mxu0 %v71
    %194 = vmatpush.msra.mxu0 %v70
    %195 = vmatpush.msra.mxu0 %v69
    %196 = vmatpush.msra.mxu0 %v68
    %197 = vmatpush.msra.mxu0 %v67
    %198 = vmatpush.msra.mxu0 %v66
    %199 = vmatmul.f32.gmra.mxu0 %v178
    %v200 = vpop.f32.mrf.mxu0
    %v201 = vadd.f32 0.0, %v200
    %202 = vdwg.mxu0
    %v203 = vadd.f32 %v182, %v201
    %s204 = scalar_lea.vmem [#allocation9], 32
    %205 = vst [vmem:[%s204] sm:$0xff] %v203
    %s206 = scalar_lea.vmem [#allocation3], 40
    %v207 = vld [vmem:[%s206] sm:$0xff]
    %208 = vmatpush.msra.mxu0 %v81
    %209 = vmatpush.msra.mxu0 %v80
    %210 = vmatpush.msra.mxu0 %v79
    %211 = vmatpush.msra.mxu0 %v78
    %212 = vmatpush.msra.mxu0 %v77
    %213 = vmatpush.msra.mxu0 %v76
    %214 = vmatpush.msra.mxu0 %v75
    %215 = vmatpush.msra.mxu0 %v74
    %216 = vmatpush.msra.mxu0 %v73
    %217 = vmatpush.msra.mxu0 %v72
    %218 = vmatpush.msra.mxu0 %v71
    %219 = vmatpush.msra.mxu0 %v70
    %220 = vmatpush.msra.mxu0 %v69
    %221 = vmatpush.msra.mxu0 %v68
    %222 = vmatpush.msra.mxu0 %v67
    %223 = vmatpush.msra.mxu0 %v66
    %224 = vmatmul.f32.gmra.mxu0 %v203
    %v225 = vpop.f32.mrf.mxu0
    %v226 = vadd.f32 0.0, %v225
    %227 = vdwg.mxu0
    %v228 = vadd.f32 %v207, %v226
    %s229 = scalar_lea.vmem [#allocation9], 40
    %230 = vst [vmem:[%s229] sm:$0xff] %v228
    %s231 = scalar_lea.vmem [#allocation3], 48
    %v232 = vld [vmem:[%s231] sm:$0xff]
    %233 = vmatpush.msra.mxu0 %v81
    %234 = vmatpush.msra.mxu0 %v80
    %235 = vmatpush.msra.mxu0 %v79
    %236 = vmatpush.msra.mxu0 %v78
    %237 = vmatpush.msra.mxu0 %v77
    %238 = vmatpush.msra.mxu0 %v76
    %239 = vmatpush.msra.mxu0 %v75
    %240 = vmatpush.msra.mxu0 %v74
    %241 = vmatpush.msra.mxu0 %v73
    %242 = vmatpush.msra.mxu0 %v72
    %243 = vmatpush.msra.mxu0 %v71
    %244 = vmatpush.msra.mxu0 %v70
    %245 = vmatpush.msra.mxu0 %v69
    %246 = vmatpush.msra.mxu0 %v68
    %247 = vmatpush.msra.mxu0 %v67
    %248 = vmatpush.msra.mxu0 %v66
    %249 = vmatmul.f32.gmra.mxu0 %v228
    %v250 = vpop.f32.mrf.mxu0
    %v251 = vadd.f32 0.0, %v250
    %252 = vdwg.mxu0
    %v253 = vadd.f32 %v232, %v251
    %s254 = scalar_lea.vmem [#allocation9], 48
    %255 = vst [vmem:[%s254] sm:$0xff] %v253
    %s256 = scalar_lea.vmem [#allocation3], 56
    %v257 = vld [vmem:[%s256] sm:$0xff]
    %258 = vmatpush.msra.mxu0 %v81
    %259 = vmatpush.msra.mxu0 %v80
    %260 = vmatpush.msra.mxu0 %v79
    %261 = vmatpush.msra.mxu0 %v78
    %262 = vmatpush.msra.mxu0 %v77
    %263 = vmatpush.msra.mxu0 %v76
    %264 = vmatpush.msra.mxu0 %v75
    %265 = vmatpush.msra.mxu0 %v74
    %266 = vmatpush.msra.mxu0 %v73
    %267 = vmatpush.msra.mxu0 %v72
    %268 = vmatpush.msra.mxu0 %v71
    %269 = vmatpush.msra.mxu0 %v70
    %270 = vmatpush.msra.mxu0 %v69
    %271 = vmatpush.msra.mxu0 %v68
    %272 = vmatpush.msra.mxu0 %v67
    %273 = vmatpush.msra.mxu0 %v66
    %274 = vmatmul.f32.gmra.mxu0 %v253
    %v275 = vpop.f32.mrf.mxu0
    %v276 = vadd.f32 0.0, %v275
    %277 = vdwg.mxu0
    %v278 = vadd.f32 %v257, %v276
    %s279 = scalar_lea.vmem [#allocation9], 56
    %280 = vst [vmem:[%s279] sm:$0xff] %v278
    %281 = vst [vmem:[#allocation2] sm:$0xff] %v278
    // Predicated region
    $region30: #{tpu_custom_call.1} parent=1 // pred_check
      _
    $region31: #{tpu_custom_call.1} parent=1 // pred_check_branch
      %283 = sbr.rel (0) target = $region33
    $region32: #{tpu_custom_call.1} parent=1 // pred_region
      %285 = vsyncadd [#allocation5], 0
      %s286 = sshll.u32 [#allocation9], 4
      %s287 = int_to_ptr.vmem [resolvable:$true] %s286
      %s288 = sshll.u32 %s3, 4
      %s289 = int_to_ptr.hbm [resolvable:$true] %s288
      %294 = dma.vmem_to_hbm [thread:$0]  %s287, 1024, %s289, [#allocation5], 128, 128, 8
    $region33: #{tpu_custom_call.1} parent=1 // pred_fallthru
      _
    // Predicated region
    $region34: #{tpu_custom_call.1} parent=1 // pred_check
      _
    $region35: #{tpu_custom_call.1} parent=1 // pred_check_branch
      %296 = sbr.rel (0) target = $region37
    $region36: #{tpu_custom_call.1} parent=1 // pred_region
      %298 = dma.done [#allocation5], 1024
    $region37: #{tpu_custom_call.1} parent=1 // pred_fallthru
      _
    %299 = vsyncpa [#allocation4], 1
    %300 = vsyncpa [#allocation7], 1
    %301 = vsyncpa [#allocation5], 1

</llo_original>
